<compile_context>
chip_gen: v5e
topology: v5e:2x2
jax: 0.10.0
libtpu: 0.0.40
codegen_flags: <defaults>
</compile_context>

<pallas_src>
import jax
import jax.numpy as jnp
from jax import lax
from jax.experimental import pallas as pl
from jax.experimental.pallas import tpu as pltpu

EPS = 1e-5                 # nn.LayerNorm default
DIM = 32                   # normalized feature dim
HIDDEN = 64                # FeedForward hidden width
DEFAULT_BLOCK_ROWS = 2048  # rows per grid step (lane width of a tile); sweep 1024-4096


def _round_up(n, m):
    return ((n + m - 1) // m) * m


# ----- Pallas kernel ----------------------------------------------------------
def _make_prenorm_kernel(n_total, tb, ragged):
    """Kernel over a lane-dense (DIM, TB) tile; n_total/tb are static ints."""

    def kernel(x_ref, g_ref, b_ref, w1_ref, b1_ref, w2_ref, b2_ref, o_ref):
        x = x_ref[...]                                    # (DIM, TB) f32, rows on lanes

        if ragged:
            # Zero the out-of-range tail lanes of the last block so the
            # (discarded-on-write) garbage columns stay finite.
            col = lax.broadcasted_iota(jnp.int32, x.shape, 1)
            x = jnp.where(pl.program_id(0) * tb + col < n_total, x, 0.0)

        # LayerNorm over the feature axis (axis 0), one column per row of x.
        mu = jnp.mean(x, axis=0, keepdims=True)           # (1, TB)
        xc = x - mu
        var = jnp.mean(xc * xc, axis=0, keepdims=True)    # biased variance
        xn = xc * lax.rsqrt(var + EPS)
        xn = xn * g_ref[...] + b_ref[...]                 # (DIM,1) affine, lane-broadcast

        # fn = FeedForward: Linear -> GELU -> Linear, transposed so TB sits on
        # the MXU N axis.  bf16 operands, f32 accumulation.
        h = jnp.dot(w1_ref[...], xn.astype(jnp.bfloat16),
                    preferred_element_type=jnp.float32) + b1_ref[...]   # (HID, TB)
        h = jax.nn.gelu(h, approximate=True)
        y = jnp.dot(w2_ref[...], h.astype(jnp.bfloat16),
                    preferred_element_type=jnp.float32) + b2_ref[...]   # (DIM, TB)

        o_ref[...] = y.astype(o_ref.dtype)

    return kernel


# ----- Wrapper ----------------------------------------------------------------
def prenorm_forward(x, params, *, block_rows=DEFAULT_BLOCK_ROWS):
    g, b, w1, b1, w2, b2 = params
    dim = x.shape[-1]
    hidden = w1.shape[-1]
    lead = x.shape[:-1]

    xf = x.reshape(-1, dim).astype(jnp.float32)
    n = xf.shape[0]

    # Lane-dense layout: rows on the 128-lane axis.
    xt = xf.T                                            # (dim, n)

    # Row tile (= lane width of a block).  Single full-extent block for small
    # n; otherwise a multiple of 128, capped so the grid keeps >= 2 steps
    # (megacore sharding on v7x).
    if n <= block_rows:
        tb = n
    else:
        tb = min(_round_up(block_rows, 128), _round_up(pl.cdiv(n, 2), 128))
    grid_n = pl.cdiv(n, tb)
    ragged = (n % tb) != 0

    # Parameters in transposed layout; weights pre-cast to bf16 (f32 MXU acc).
    g_t = g.T.astype(jnp.float32)        # (dim, 1)
    beta_t = b.T.astype(jnp.float32)     # (dim, 1)
    w1_t = w1.T.astype(jnp.bfloat16)     # (hidden, dim)
    b1_t = b1.T.astype(jnp.float32)      # (hidden, 1)
    w2_t = w2.T.astype(jnp.bfloat16)     # (dim, hidden)
    b2_t = b2.T.astype(jnp.float32)      # (dim, 1)

    p_ops = (g_t, beta_t, w1_t, b1_t, w2_t, b2_t)
    param_bytes = sum(int(p.size) * p.dtype.itemsize for p in p_ops)
    cost = pl.CostEstimate(
        flops=4 * n * dim * hidden + 10 * n * dim,
        transcendentals=n * (hidden + 1),                # gelu tanh + rsqrt
        bytes_accessed=2 * n * dim * 4 + param_bytes,
    )

    const = lambda i: (0, 0)
    col_map = lambda i: (0, i)

    out_t = pl.pallas_call(
        _make_prenorm_kernel(n, tb, ragged),
        out_shape=jax.ShapeDtypeStruct((dim, n), jnp.float32),
        grid_spec=pltpu.PrefetchScalarGridSpec(
            num_scalar_prefetch=0,
            grid=(grid_n,),
            in_specs=[
                pl.BlockSpec((dim, tb), col_map),        # x tile (lane-dense)
                pl.BlockSpec((dim, 1), const),           # gamma
                pl.BlockSpec((dim, 1), const),           # beta
                pl.BlockSpec((hidden, dim), const),      # W1^T (bf16)
                pl.BlockSpec((hidden, 1), const),        # b1
                pl.BlockSpec((dim, hidden), const),      # W2^T (bf16)
                pl.BlockSpec((dim, 1), const),           # b2
            ],
            out_specs=pl.BlockSpec((dim, tb), col_map),  # lane-dense output block
        ),
        compiler_params=pltpu.CompilerParams(dimension_semantics=("parallel",)),
        cost_estimate=cost,
    )(xt, *p_ops)

    return out_t.T.reshape(*lead, dim)


# ----- Deterministic parameter init (mirrors nn.LayerNorm / nn.Linear) --------
def init_params(key, dim=DIM, hidden=HIDDEN):
    k1, k2, k3, k4 = jax.random.split(key, 4)
    s1 = dim ** -0.5
    s2 = hidden ** -0.5
    w1 = jax.random.uniform(k1, (dim, hidden), jnp.float32, -s1, s1)
    b1 = jax.random.uniform(k2, (1, hidden), jnp.float32, -s1, s1)
    w2 = jax.random.uniform(k3, (hidden, dim), jnp.float32, -s2, s2)
    b2 = jax.random.uniform(k4, (1, dim), jnp.float32, -s2, s2)
    gamma = jnp.ones((1, dim), jnp.float32)              # LayerNorm default init
    beta = jnp.zeros((1, dim), jnp.float32)
    return (gamma, beta, w1, b1, w2, b2)


# ----- Pure-JAX reference (mirrors the PyTorch forward, all f32) ---------------
def prenorm_reference(x, params):
    g, b, w1, b1, w2, b2 = params
    mu = jnp.mean(x, axis=-1, keepdims=True)
    xc = x - mu
    var = jnp.mean(xc * xc, axis=-1, keepdims=True)
    xn = xc * lax.rsqrt(var + EPS) * g[0] + b[0]
    h = jax.nn.gelu(xn @ w1 + b1[0], approximate=True)
    return h @ w2 + b2[0]


if __name__ == "__main__":
    key = jax.random.PRNGKey(0)
    kx, kp = jax.random.split(key)

    B, S = 2, 100                                        # N = 200 rows (non-power-of-2)
    x = jax.random.normal(kx, (B, S, DIM), jnp.float32)
    params = init_params(kp)

    out = jax.block_until_ready(prenorm_forward(x, params))
    ref = prenorm_reference(x, params)

    assert out.shape == x.shape
    # bf16 matmul operands with f32 accumulation => ~1e-3 deviation vs the
    # all-f32 reference; tolerance documented here.
    assert jnp.allclose(out, ref, atol=3e-2, rtol=3e-2), "mismatch vs reference"

    print("KERNEL_OK")
</pallas_src>

<mosaic_0001>
module attributes {stable_mosaic.version = 11 : i64} {
  func.func @kernel(%arg0: i32, %arg1: memref<32x200xf32, #tpu.memory_space<vmem>>, %arg2: memref<32x1xf32, #tpu.memory_space<vmem>>, %arg3: memref<32x1xf32, #tpu.memory_space<vmem>>, %arg4: memref<64x32xbf16, #tpu.memory_space<vmem>>, %arg5: memref<64x1xf32, #tpu.memory_space<vmem>>, %arg6: memref<32x64xbf16, #tpu.memory_space<vmem>>, %arg7: memref<32x1xf32, #tpu.memory_space<vmem>>, %arg8: memref<32x200xf32, #tpu.memory_space<vmem>>) attributes {dimension_semantics = [#tpu.dimension_semantics<parallel>], iteration_bounds = array<i64: 1>, scalar_prefetch = 0 : i64, scratch_operands = 0 : i64, tpu.core_type = #tpu.core_type<tc>, window_params = [{transform_indices = @transform_0, window_bounds = array<i64: 32, 200>}, {pipeline_mode = #tpu.pipeline_mode<synchronous>, transform_indices = @transform_1, window_bounds = array<i64: 32, 1>}, {pipeline_mode = #tpu.pipeline_mode<synchronous>, transform_indices = @transform_2, window_bounds = array<i64: 32, 1>}, {pipeline_mode = #tpu.pipeline_mode<synchronous>, transform_indices = @transform_3, window_bounds = array<i64: 64, 32>}, {pipeline_mode = #tpu.pipeline_mode<synchronous>, transform_indices = @transform_4, window_bounds = array<i64: 64, 1>}, {pipeline_mode = #tpu.pipeline_mode<synchronous>, transform_indices = @transform_5, window_bounds = array<i64: 32, 64>}, {pipeline_mode = #tpu.pipeline_mode<synchronous>, transform_indices = @transform_6, window_bounds = array<i64: 32, 1>}, {transform_indices = @transform_7, window_bounds = array<i64: 32, 200>}]} {
    %c0 = arith.constant 0 : index
    %c0_0 = arith.constant 0 : index
    %0 = vector.load %arg1[%c0, %c0_0] : memref<32x200xf32, #tpu.memory_space<vmem>>, vector<32x200xf32>
    %cst = arith.constant dense<0.000000e+00> : vector<200xf32>
    %1 = vector.multi_reduction <add>, %0, %cst [0] : vector<32x200xf32> to vector<200xf32>
    %2 = vector.shape_cast %1 : vector<200xf32> to vector<1x200xf32>
    %cst_1 = arith.constant 3.200000e+01 : f32
    %3 = vector.broadcast %cst_1 : f32 to vector<1x200xf32>
    %4 = arith.divf %2, %3 : vector<1x200xf32>
    %5 = vector.broadcast %4 : vector<1x200xf32> to vector<32x200xf32>
    %6 = arith.subf %0, %5 : vector<32x200xf32>
    %7 = arith.mulf %6, %6 : vector<32x200xf32>
    %cst_2 = arith.constant dense<0.000000e+00> : vector<200xf32>
    %8 = vector.multi_reduction <add>, %7, %cst_2 [0] : vector<32x200xf32> to vector<200xf32>
    %9 = vector.shape_cast %8 : vector<200xf32> to vector<1x200xf32>
    %cst_3 = arith.constant 3.200000e+01 : f32
    %10 = vector.broadcast %cst_3 : f32 to vector<1x200xf32>
    %11 = arith.divf %9, %10 : vector<1x200xf32>
    %cst_4 = arith.constant 9.99999974E-6 : f32
    %12 = vector.broadcast %cst_4 : f32 to vector<1x200xf32>
    %13 = arith.addf %11, %12 : vector<1x200xf32>
    %14 = math.rsqrt %13 : vector<1x200xf32>
    %15 = vector.broadcast %14 : vector<1x200xf32> to vector<32x200xf32>
    %16 = arith.mulf %6, %15 : vector<32x200xf32>
    %c0_5 = arith.constant 0 : index
    %c0_6 = arith.constant 0 : index
    %17 = vector.load %arg2[%c0_5, %c0_6] : memref<32x1xf32, #tpu.memory_space<vmem>>, vector<32x1xf32>
    %18 = vector.broadcast %17 : vector<32x1xf32> to vector<32x200xf32>
    %19 = arith.mulf %16, %18 : vector<32x200xf32>
    %c0_7 = arith.constant 0 : index
    %c0_8 = arith.constant 0 : index
    %20 = vector.load %arg3[%c0_7, %c0_8] : memref<32x1xf32, #tpu.memory_space<vmem>>, vector<32x1xf32>
    %21 = vector.broadcast %20 : vector<32x1xf32> to vector<32x200xf32>
    %22 = arith.addf %19, %21 : vector<32x200xf32>
    %c0_9 = arith.constant 0 : index
    %c0_10 = arith.constant 0 : index
    %23 = vector.load %arg4[%c0_9, %c0_10] : memref<64x32xbf16, #tpu.memory_space<vmem>>, vector<64x32xbf16>
    %24 = arith.truncf %22 : vector<32x200xf32> to vector<32x200xbf16>
    %cst_11 = arith.constant dense<0.000000e+00> : vector<64x200xf32>
    %25 = tpu.matmul %23, %24, %cst_11 {dimension_numbers = #tpu.dot_dimension_numbers<[1], [0], [0], [1], [0, 0, 1, 1], [], []>} : vector<64x32xbf16>, vector<32x200xbf16>, vector<64x200xf32> -> vector<64x200xf32>
    %c0_12 = arith.constant 0 : index
    %c0_13 = arith.constant 0 : index
    %26 = vector.load %arg5[%c0_12, %c0_13] : memref<64x1xf32, #tpu.memory_space<vmem>>, vector<64x1xf32>
    %27 = vector.broadcast %26 : vector<64x1xf32> to vector<64x200xf32>
    %28 = arith.addf %25, %27 : vector<64x200xf32>
    %29 = arith.mulf %28, %28 : vector<64x200xf32>
    %30 = arith.mulf %28, %29 : vector<64x200xf32>
    %cst_14 = arith.constant 4.471500e-02 : f32
    %31 = vector.broadcast %cst_14 : f32 to vector<64x200xf32>
    %32 = arith.mulf %31, %30 : vector<64x200xf32>
    %33 = arith.addf %28, %32 : vector<64x200xf32>
    %cst_15 = arith.constant 0.797884583 : f32
    %34 = vector.broadcast %cst_15 : f32 to vector<64x200xf32>
    %35 = arith.mulf %34, %33 : vector<64x200xf32>
    %36 = math.tanh %35 : vector<64x200xf32>
    %cst_16 = arith.constant 1.000000e+00 : f32
    %37 = vector.broadcast %cst_16 : f32 to vector<64x200xf32>
    %38 = arith.addf %37, %36 : vector<64x200xf32>
    %cst_17 = arith.constant 5.000000e-01 : f32
    %39 = vector.broadcast %cst_17 : f32 to vector<64x200xf32>
    %40 = arith.mulf %39, %38 : vector<64x200xf32>
    %41 = arith.mulf %28, %40 : vector<64x200xf32>
    %c0_18 = arith.constant 0 : index
    %c0_19 = arith.constant 0 : index
    %42 = vector.load %arg6[%c0_18, %c0_19] : memref<32x64xbf16, #tpu.memory_space<vmem>>, vector<32x64xbf16>
    %43 = arith.truncf %41 : vector<64x200xf32> to vector<64x200xbf16>
    %cst_20 = arith.constant dense<0.000000e+00> : vector<32x200xf32>
    %44 = tpu.matmul %42, %43, %cst_20 {dimension_numbers = #tpu.dot_dimension_numbers<[1], [0], [0], [1], [0, 0, 1, 1], [], []>} : vector<32x64xbf16>, vector<64x200xbf16>, vector<32x200xf32> -> vector<32x200xf32>
    %c0_21 = arith.constant 0 : index
    %c0_22 = arith.constant 0 : index
    %45 = vector.load %arg7[%c0_21, %c0_22] : memref<32x1xf32, #tpu.memory_space<vmem>>, vector<32x1xf32>
    %46 = vector.broadcast %45 : vector<32x1xf32> to vector<32x200xf32>
    %47 = arith.addf %44, %46 : vector<32x200xf32>
    %c0_23 = arith.constant 0 : index
    %c0_24 = arith.constant 0 : index
    %48 = vector.load %arg8[%c0_23, %c0_24] : memref<32x200xf32, #tpu.memory_space<vmem>>, vector<32x200xf32>
    tpu.vector_store %arg8[%c0_23, %c0_24], %47 {strides = array<i32>} : memref<32x200xf32, #tpu.memory_space<vmem>>, vector<32x200xf32>,
    return
  }
  func.func @transform_0(%arg0: i32) -> (i32, i32) {
    %c0_i32 = arith.constant 0 : i32
    %c0_i32_0 = arith.constant 0 : i32
    return %c0_i32, %arg0 : i32, i32
  }
  func.func @transform_1(%arg0: i32) -> (i32, i32) {
    %c0_i32 = arith.constant 0 : i32
    %c0_i32_0 = arith.constant 0 : i32
    %c0_i32_1 = arith.constant 0 : i32
    return %c0_i32, %c0_i32_0 : i32, i32
  }
  func.func @transform_2(%arg0: i32) -> (i32, i32) {
    %c0_i32 = arith.constant 0 : i32
    %c0_i32_0 = arith.constant 0 : i32
    %c0_i32_1 = arith.constant 0 : i32
    return %c0_i32, %c0_i32_0 : i32, i32
  }
  func.func @transform_3(%arg0: i32) -> (i32, i32) {
    %c0_i32 = arith.constant 0 : i32
    %c0_i32_0 = arith.constant 0 : i32
    %c0_i32_1 = arith.constant 0 : i32
    return %c0_i32, %c0_i32_0 : i32, i32
  }
  func.func @transform_4(%arg0: i32) -> (i32, i32) {
    %c0_i32 = arith.constant 0 : i32
    %c0_i32_0 = arith.constant 0 : i32
    %c0_i32_1 = arith.constant 0 : i32
    return %c0_i32, %c0_i32_0 : i32, i32
  }
  func.func @transform_5(%arg0: i32) -> (i32, i32) {
    %c0_i32 = arith.constant 0 : i32
    %c0_i32_0 = arith.constant 0 : i32
    %c0_i32_1 = arith.constant 0 : i32
    return %c0_i32, %c0_i32_0 : i32, i32
  }
  func.func @transform_6(%arg0: i32) -> (i32, i32) {
    %c0_i32 = arith.constant 0 : i32
    %c0_i32_0 = arith.constant 0 : i32
    %c0_i32_1 = arith.constant 0 : i32
    return %c0_i32, %c0_i32_0 : i32, i32
  }
  func.func @transform_7(%arg0: i32) -> (i32, i32) {
    %c0_i32 = arith.constant 0 : i32
    %c0_i32_0 = arith.constant 0 : i32
    return %c0_i32, %arg0 : i32, i32
  }
}

</mosaic_0001>

<llo_original>
// kernel: tpu_custom_call.1
$region0: #{tpu_custom_call.1}
  #allocation0 [shape = 'u32[]', space=smem, size = 0x4, offset = 0x4, fixed_abs, tag = 'smem constant byte address 0x4 - core index']
  #allocation1 [shape = 'u32[72,128]{1,0:T(1,128)}', space=vmem, size = 0x9000, scoped, tag = 'internal scratch']
  %s0 = inlined_call_operand.vmem [shape: f32[32,200], index: 0, kind: input, shape index: {}]
  %s1 = inlined_call_operand.vmem [shape: f32[32,1], index: 1, kind: input, shape index: {}]
  %s2 = inlined_call_operand.vmem [shape: f32[32,1], index: 2, kind: input, shape index: {}]
  %s3 = inlined_call_operand.vmem [shape: bf16[64,32], index: 3, kind: input, shape index: {}]
  %s4 = inlined_call_operand.vmem [shape: f32[64,1], index: 4, kind: input, shape index: {}]
  %s5 = inlined_call_operand.vmem [shape: bf16[32,64], index: 5, kind: input, shape index: {}]
  %s6 = inlined_call_operand.vmem [shape: f32[32,1], index: 6, kind: input, shape index: {}]
  %s7 = inlined_call_operand.hbm [shape: f32[32,200], index: 7, kind: output, shape index: {}]
  %s8 = sld [smem:[#allocation0]]
  $region38: #{tpu_custom_call.1} parent=0
    _
  %s10 = ssub.s32 1, %s8
  %s11 = scalar_select 0, %s10, %s8
  $region1: #{tpu_custom_call.1} parent=0
    #allocation2 [shape = 'u8[32768]{0}', space=vmem, size = 0x8000, scoped, tag = 'output window, operand 0, single buffered']
    #allocation3 [shape = 's32[1]{0}', space=sflag, size = 0x4, scoped, tag = 'scoped memory for tpu_custom_call.1']
    %12 = vsyncpa [#allocation3], 0
    // Predicated region
    $region2: #{tpu_custom_call.1} parent=1 // pred_check
      _
    $region3: #{tpu_custom_call.1} parent=1 // pred_check_branch
      %14 = sbr.rel (0) target = $region5
    $region4: #{tpu_custom_call.1} parent=1 // pred_region
      _
    $region5: #{tpu_custom_call.1} parent=1 // pred_fallthru
      _
    // Predicated region
    $region6: #{tpu_custom_call.1} parent=1 // pred_check
      _
    $region7: #{tpu_custom_call.1} parent=1 // pred_check_branch
      %16 = sbr.rel (0) target = $region9
    $region8: #{tpu_custom_call.1} parent=1 // pred_region
      _
    $region9: #{tpu_custom_call.1} parent=1 // pred_fallthru
      _
    // Predicated region
    $region10: #{tpu_custom_call.1} parent=1 // pred_check
      _
    $region11: #{tpu_custom_call.1} parent=1 // pred_check_branch
      %18 = sbr.rel (0) target = $region13
    $region12: #{tpu_custom_call.1} parent=1 // pred_region
      _
    $region13: #{tpu_custom_call.1} parent=1 // pred_fallthru
      _
    // Predicated region
    $region14: #{tpu_custom_call.1} parent=1 // pred_check
      _
    $region15: #{tpu_custom_call.1} parent=1 // pred_check_branch
      %20 = sbr.rel (0) target = $region17
    $region16: #{tpu_custom_call.1} parent=1 // pred_region
      _
    $region17: #{tpu_custom_call.1} parent=1 // pred_fallthru
      _
    // Predicated region
    $region18: #{tpu_custom_call.1} parent=1 // pred_check
      _
    $region19: #{tpu_custom_call.1} parent=1 // pred_check_branch
      %22 = sbr.rel (0) target = $region21
    $region20: #{tpu_custom_call.1} parent=1 // pred_region
      _
    $region21: #{tpu_custom_call.1} parent=1 // pred_fallthru
      _
    // Predicated region
    $region22: #{tpu_custom_call.1} parent=1 // pred_check
      _
    $region23: #{tpu_custom_call.1} parent=1 // pred_check_branch
      %24 = sbr.rel (0) target = $region25
    $region24: #{tpu_custom_call.1} parent=1 // pred_region
      _
    $region25: #{tpu_custom_call.1} parent=1 // pred_fallthru
      _
    // Predicated region
    $region26: #{tpu_custom_call.1} parent=1 // pred_check
      _
    $region27: #{tpu_custom_call.1} parent=1 // pred_check_branch
      %26 = sbr.rel (0) target = $region29
    $region28: #{tpu_custom_call.1} parent=1 // pred_region
      _
    $region29: #{tpu_custom_call.1} parent=1 // pred_fallthru
      _
    %v28 = vld [vmem:[%s0] sm:$0xff]
    %v29 = vld [vmem:[%s0 + $0x8] sm:$0xff]
    %v30 = vld [vmem:[%s0 + $0x10] sm:$0xff]
    %v31 = vld [vmem:[%s0 + $0x18] sm:$0xff]
    %v32 = vld [vmem:[%s0 + $0x20] sm:$0xff]
    %v33 = vld [vmem:[%s0 + $0x28] sm:$0xff]
    %v34 = vld [vmem:[%s0 + $0x30] sm:$0xff]
    %v35 = vld [vmem:[%s0 + $0x38] sm:$0xff]
    %v36 = vadd.f32 %v28, %v30
    %v37 = vadd.f32 %v36, %v32
    %v38 = vadd.f32 %v37, %v34
    %v39 = vrot.slane %v38, 4
    %v40 = vadd.f32 %v38, %v39
    %v41 = vrot.slane %v40, 2
    %v42 = vadd.f32 %v40, %v41
    %v43 = vrot.slane %v42, 1
    %v44 = vadd.f32 %v42, %v43
    %vm45 = vcmask 588800
    %v46 = vsel %vm45, %v29, 0.0
    %v47 = vsel %vm45, %v31, 0.0
    %v48 = vadd.f32 %v46, %v47
    %v49 = vsel %vm45, %v33, 0.0
    %v50 = vadd.f32 %v48, %v49
    %v51 = vsel %vm45, %v35, 0.0
    %v52 = vadd.f32 %v50, %v51
    %v53 = vrot.slane %v52, 4
    %v54 = vadd.f32 %v52, %v53
    %v55 = vrot.slane %v54, 2
    %v56 = vadd.f32 %v54, %v55
    %v57 = vrot.slane %v56, 1
    %v58 = vadd.f32 %v56, %v57
    %v59 = vrcp.pop 32.0
    %v60 = vmul.f32 32.0, %v59
    %v61 = vsub.f32 1.0, %v60
    %v62 = vmul.f32 %v59, %v61
    %v63 = vadd.f32 %v59, %v62
    %vm64 = vweird.f32 %v59
    %v65 = vsel %vm64, %v59, %v63
    %v66 = vmul.f32 %v44, %v65
    %v67 = vmul.f32 %v58, %v65
    %v68 = vsub.f32 %v28, %v66
    %v69 = vsub.f32 %v29, %v67
    %v70 = vsub.f32 %v30, %v66
    %v71 = vsub.f32 %v31, %v67
    %v72 = vsub.f32 %v32, %v66
    %v73 = vsub.f32 %v33, %v67
    %v74 = vsub.f32 %v34, %v66
    %v75 = vsub.f32 %v35, %v67
    %v76 = vmul.f32 %v68, %v68
    %v77 = vmul.f32 %v69, %v69
    %v78 = vmul.f32 %v70, %v70
    %v79 = vmul.f32 %v71, %v71
    %v80 = vmul.f32 %v72, %v72
    %v81 = vmul.f32 %v73, %v73
    %v82 = vmul.f32 %v74, %v74
    %v83 = vmul.f32 %v75, %v75
    %v84 = vadd.f32 %v76, %v78
    %v85 = vadd.f32 %v84, %v80
    %v86 = vadd.f32 %v85, %v82
    %v87 = vrot.slane %v86, 4
    %v88 = vadd.f32 %v86, %v87
    %v89 = vrot.slane %v88, 2
    %v90 = vadd.f32 %v88, %v89
    %v91 = vrot.slane %v90, 1
    %v92 = vadd.f32 %v90, %v91
    %v93 = vsel %vm45, %v77, 0.0
    %v94 = vsel %vm45, %v79, 0.0
    %v95 = vadd.f32 %v93, %v94
    %v96 = vsel %vm45, %v81, 0.0
    %v97 = vadd.f32 %v95, %v96
    %v98 = vsel %vm45, %v83, 0.0
    %v99 = vadd.f32 %v97, %v98
    %v100 = vrot.slane %v99, 4
    %v101 = vadd.f32 %v99, %v100
    %v102 = vrot.slane %v101, 2
    %v103 = vadd.f32 %v101, %v102
    %v104 = vrot.slane %v103, 1
    %v105 = vadd.f32 %v103, %v104
    %v106 = vmul.f32 %v92, %v65
    %v107 = vmul.f32 %v105, %v65
    %v108 = vadd.f32 %v106, 1e-05
    %v109 = vadd.f32 %v107, 1e-05
    %v110 = vrsqrt.pop %v108
    %v111 = vmul.f32 %v110, %v108
    %v112 = vmul.f32 %v111, %v110
    %v113 = vmul.f32 0.5, %v112
    %v114 = vsub.f32 1.5, %v113
    %v115 = vmul.f32 %v110, %v114
    %vm116 = vweird.f32 %v108
    %vm117 = vweird.f32 %v110
    %vm118 = vmor %vm116, %vm117
    %v119 = vsel %vm118, %v110, %v115
    %v120 = vrsqrt.pop %v109
    %v121 = vmul.f32 %v120, %v109
    %v122 = vmul.f32 %v121, %v120
    %v123 = vmul.f32 0.5, %v122
    %v124 = vsub.f32 1.5, %v123
    %v125 = vmul.f32 %v120, %v124
    %vm126 = vweird.f32 %v109
    %vm127 = vweird.f32 %v120
    %vm128 = vmor %vm126, %vm127
    %v129 = vsel %vm128, %v120, %v125
    %v130 = vmul.f32 %v68, %v119
    %v131 = vmul.f32 %v69, %v129
    %v132 = vmul.f32 %v70, %v119
    %v133 = vmul.f32 %v71, %v129
    %v134 = vmul.f32 %v72, %v119
    %v135 = vmul.f32 %v73, %v129
    %v136 = vmul.f32 %v74, %v119
    %v137 = vmul.f32 %v75, %v129
    %v138 = vld [vmem:[%s1] sm:$0xff]
    %v139 = vld [vmem:[%s1 + $0x8] sm:$0xff]
    %v140 = vld [vmem:[%s1 + $0x10] sm:$0xff]
    %v141 = vld [vmem:[%s1 + $0x18] sm:$0xff]
    %143 = vset.pattern.permute.xlu0 0
    %144 = vperm.xlu0 %143, %v138
    %v145 = vpop.permute.xlu0 %144
    %148 = vset.pattern.permute.xlu0 0
    %149 = vperm.xlu0 %148, %v139
    %v150 = vpop.permute.xlu0 %149
    %153 = vset.pattern.permute.xlu0 0
    %154 = vperm.xlu0 %153, %v140
    %v155 = vpop.permute.xlu0 %154
    %158 = vset.pattern.permute.xlu0 0
    %159 = vperm.xlu0 %158, %v141
    %v160 = vpop.permute.xlu0 %159
    %v162 = vmul.f32 %v130, %v145
    %v163 = vmul.f32 %v131, %v145
    %v164 = vmul.f32 %v132, %v150
    %v165 = vmul.f32 %v133, %v150
    %v166 = vmul.f32 %v134, %v155
    %v167 = vmul.f32 %v135, %v155
    %v168 = vmul.f32 %v136, %v160
    %v169 = vmul.f32 %v137, %v160
    %v170 = vld [vmem:[%s2] sm:$0xff]
    %v171 = vld [vmem:[%s2 + $0x8] sm:$0xff]
    %v172 = vld [vmem:[%s2 + $0x10] sm:$0xff]
    %v173 = vld [vmem:[%s2 + $0x18] sm:$0xff]
    %175 = vset.pattern.permute.xlu0 0
    %176 = vperm.xlu0 %175, %v170
    %v177 = vpop.permute.xlu0 %176
    %180 = vset.pattern.permute.xlu0 0
    %181 = vperm.xlu0 %180, %v171
    %v182 = vpop.permute.xlu0 %181
    %185 = vset.pattern.permute.xlu0 0
    %186 = vperm.xlu0 %185, %v172
    %v187 = vpop.permute.xlu0 %186
    %190 = vset.pattern.permute.xlu0 0
    %191 = vperm.xlu0 %190, %v173
    %v192 = vpop.permute.xlu0 %191
    %v194 = vadd.f32 %v162, %v177
    %v195 = vadd.f32 %v163, %v177
    %v196 = vadd.f32 %v164, %v182
    %v197 = vadd.f32 %v165, %v182
    %v198 = vadd.f32 %v166, %v187
    %v199 = vadd.f32 %v167, %v187
    %v200 = vadd.f32 %v168, %v192
    %v201 = vadd.f32 %v169, %v192
    %v202 = vld [vmem:[%s3] sm:$0xf]
    %v203 = vld [vmem:[%s3 + $0x4] sm:$0xf]
    %v204 = vld [vmem:[%s3 + $0x8] sm:$0xf]
    %v205 = vld [vmem:[%s3 + $0xc] sm:$0xf]
    %v206 = vld [vmem:[%s3 + $0x10] sm:$0xf]
    %v207 = vld [vmem:[%s3 + $0x14] sm:$0xf]
    %v208 = vld [vmem:[%s3 + $0x18] sm:$0xf]
    %v209 = vld [vmem:[%s3 + $0x1c] sm:$0xf]
    %v210 = vpack.c.bf16 %v196, %v194
    %v211 = vpack.c.bf16 %v197, %v195
    %v212 = vpack.c.bf16 %v200, %v198
    %v213 = vpack.c.bf16 %v201, %v199
    %v214 = vld [vmem:[%s4] sm:$0xff]
    %v215 = vld [vmem:[%s4 + $0x8] sm:$0xff]
    %v216 = vld [vmem:[%s4 + $0x10] sm:$0xff]
    %v217 = vld [vmem:[%s4 + $0x18] sm:$0xff]
    %v218 = vld [vmem:[%s4 + $0x20] sm:$0xff]
    %v219 = vld [vmem:[%s4 + $0x28] sm:$0xff]
    %v220 = vld [vmem:[%s4 + $0x30] sm:$0xff]
    %v221 = vld [vmem:[%s4 + $0x38] sm:$0xff]
    %223 = vset.pattern.permute.xlu0 0
    %224 = vperm.xlu0 %223, %v214
    %v225 = vpop.permute.xlu0 %224
    %228 = vset.pattern.permute.xlu0 0
    %229 = vperm.xlu0 %228, %v215
    %v230 = vpop.permute.xlu0 %229
    %233 = vset.pattern.permute.xlu0 0
    %234 = vperm.xlu0 %233, %v216
    %v235 = vpop.permute.xlu0 %234
    %238 = vset.pattern.permute.xlu0 0
    %239 = vperm.xlu0 %238, %v217
    %v240 = vpop.permute.xlu0 %239
    %243 = vset.pattern.permute.xlu0 0
    %244 = vperm.xlu0 %243, %v218
    %v245 = vpop.permute.xlu0 %244
    %248 = vset.pattern.permute.xlu0 0
    %249 = vperm.xlu0 %248, %v219
    %v250 = vpop.permute.xlu0 %249
    %253 = vset.pattern.permute.xlu0 0
    %254 = vperm.xlu0 %253, %v220
    %v255 = vpop.permute.xlu0 %254
    %258 = vset.pattern.permute.xlu0 0
    %259 = vperm.xlu0 %258, %v221
    %v260 = vpop.permute.xlu0 %259
    %v270 = vunpack.c.l.b16 %v202
    %v271 = vunpack.c.l.b16 %v203
    %v272 = vunpack.c.l.b16 %v204
    %v273 = vunpack.c.l.b16 %v205
    %v274 = vunpack.c.l.b16 %v206
    %v275 = vunpack.c.l.b16 %v207
    %v276 = vunpack.c.l.b16 %v208
    %v277 = vunpack.c.l.b16 %v209
    %v278 = vpack.c.b16 %v271, %v270
    %v279 = vpack.c.b16 %v273, %v272
    %v280 = vpack.c.b16 %v275, %v274
    %v281 = vpack.c.b16 %v277, %v276
    %vm282 = vcmask 261120
    %v284 = vsel %vm282, %v278, 0
    %v287 = vsel %vm282, %v279, 0
    %v290 = vsel %vm282, %v280, 0
    %v293 = vsel %vm282, %v281, 0
    %295 = vmatpush.bf16.msra.mxu0 0
    %296 = vmatpush.bf16.msra.mxu0 0
    %297 = vmatpush.bf16.msra.mxu0 0
    %298 = vmatpush.bf16.msra.mxu0 0
    %299 = vmatpush.bf16.msra.mxu0 0
    %300 = vmatpush.bf16.msra.mxu0 0
    %301 = vmatpush.bf16.msra.mxu0 %v212
    %302 = vmatpush.bf16.msra.mxu0 %v210
    %303 = vmatmul.bf16.gmra.mxu0 %v284
    %v304 = vpop.f32.mrf.mxu0
    %v305 = vadd.f32 %v225, %v304
    %v306 = vpop.f32.mrf.mxu0
    %v307 = vadd.f32 %v230, %v306
    %308 = vmatmul.bf16.gmra.mxu0 %v287
    %v309 = vpop.f32.mrf.mxu0
    %v310 = vadd.f32 %v235, %v309
    %v311 = vpop.f32.mrf.mxu0
    %v312 = vadd.f32 %v240, %v311
    %313 = vmatmul.bf16.gmra.mxu0 %v290
    %v314 = vpop.f32.mrf.mxu0
    %v315 = vadd.f32 %v245, %v314
    %v316 = vpop.f32.mrf.mxu0
    %v317 = vadd.f32 %v250, %v316
    %318 = vmatmul.bf16.gmra.mxu0 %v293
    %v319 = vpop.f32.mrf.mxu0
    %v320 = vadd.f32 %v255, %v319
    %v321 = vpop.f32.mrf.mxu0
    %v322 = vadd.f32 %v260, %v321
    %323 = vdwg.mxu0
    %324 = vmatpush.bf16.msra.mxu0 0
    %325 = vmatpush.bf16.msra.mxu0 0
    %326 = vmatpush.bf16.msra.mxu0 0
    %327 = vmatpush.bf16.msra.mxu0 0
    %328 = vmatpush.bf16.msra.mxu0 0
    %329 = vmatpush.bf16.msra.mxu0 0
    %330 = vmatpush.bf16.msra.mxu0 %v213
    %331 = vmatpush.bf16.msra.mxu0 %v211
    %332 = vmatmul.bf16.gmra.mxu0 %v284
    %v333 = vpop.f32.mrf.mxu0
    %v334 = vadd.f32 %v225, %v333
    %v335 = vpop.f32.mrf.mxu0
    %v336 = vadd.f32 %v230, %v335
    %337 = vmatmul.bf16.gmra.mxu0 %v287
    %v338 = vpop.f32.mrf.mxu0
    %v339 = vadd.f32 %v235, %v338
    %v340 = vpop.f32.mrf.mxu0
    %v341 = vadd.f32 %v240, %v340
    %342 = vmatmul.bf16.gmra.mxu0 %v290
    %v343 = vpop.f32.mrf.mxu0
    %v344 = vadd.f32 %v245, %v343
    %v345 = vpop.f32.mrf.mxu0
    %v346 = vadd.f32 %v250, %v345
    %347 = vmatmul.bf16.gmra.mxu0 %v293
    %v348 = vpop.f32.mrf.mxu0
    %v349 = vadd.f32 %v255, %v348
    %v350 = vpop.f32.mrf.mxu0
    %v351 = vadd.f32 %v260, %v350
    %352 = vdwg.mxu0
    %v353 = vmul.f32 %v305, %v305
    %v354 = vmul.f32 %v334, %v334
    %v355 = vmul.f32 %v307, %v307
    %v356 = vmul.f32 %v336, %v336
    %v357 = vmul.f32 %v310, %v310
    %v358 = vmul.f32 %v339, %v339
    %v359 = vmul.f32 %v312, %v312
    %v360 = vmul.f32 %v341, %v341
    %v361 = vmul.f32 %v315, %v315
    %v362 = vmul.f32 %v344, %v344
    %v363 = vmul.f32 %v317, %v317
    %v364 = vmul.f32 %v346, %v346
    %v365 = vmul.f32 %v320, %v320
    %v366 = vmul.f32 %v349, %v349
    %v367 = vmul.f32 %v322, %v322
    %v368 = vmul.f32 %v351, %v351
    %v369 = vmul.f32 %v305, %v353
    %v370 = vmul.f32 %v334, %v354
    %v371 = vmul.f32 %v307, %v355
    %v372 = vmul.f32 %v336, %v356
    %v373 = vmul.f32 %v310, %v357
    %v374 = vmul.f32 %v339, %v358
    %v375 = vmul.f32 %v312, %v359
    %v376 = vmul.f32 %v341, %v360
    %v377 = vmul.f32 %v315, %v361
    %v378 = vmul.f32 %v344, %v362
    %v379 = vmul.f32 %v317, %v363
    %v380 = vmul.f32 %v346, %v364
    %v381 = vmul.f32 %v320, %v365
    %v382 = vmul.f32 %v349, %v366
    %v383 = vmul.f32 %v322, %v367
    %v384 = vmul.f32 %v351, %v368
    %v385 = vmul.f32 %v369, 0.044715
    %v386 = vmul.f32 %v370, 0.044715
    %v387 = vmul.f32 %v371, 0.044715
    %v388 = vmul.f32 %v372, 0.044715
    %v389 = vmul.f32 %v373, 0.044715
    %v390 = vmul.f32 %v374, 0.044715
    %v391 = vmul.f32 %v375, 0.044715
    %v392 = vmul.f32 %v376, 0.044715
    %v393 = vmul.f32 %v377, 0.044715
    %v394 = vmul.f32 %v378, 0.044715
    %v395 = vmul.f32 %v379, 0.044715
    %v396 = vmul.f32 %v380, 0.044715
    %v397 = vmul.f32 %v381, 0.044715
    %v398 = vmul.f32 %v382, 0.044715
    %v399 = vmul.f32 %v383, 0.044715
    %v400 = vmul.f32 %v384, 0.044715
    %v401 = vadd.f32 %v305, %v385
    %v402 = vadd.f32 %v334, %v386
    %v403 = vadd.f32 %v307, %v387
    %v404 = vadd.f32 %v336, %v388
    %v405 = vadd.f32 %v310, %v389
    %v406 = vadd.f32 %v339, %v390
    %v407 = vadd.f32 %v312, %v391
    %v408 = vadd.f32 %v341, %v392
    %v409 = vadd.f32 %v315, %v393
    %v410 = vadd.f32 %v344, %v394
    %v411 = vadd.f32 %v317, %v395
    %v412 = vadd.f32 %v346, %v396
    %v413 = vadd.f32 %v320, %v397
    %v414 = vadd.f32 %v349, %v398
    %v415 = vadd.f32 %v322, %v399
    %v416 = vadd.f32 %v351, %v400
    %v417 = vmul.f32 %v401, 0.7978846
    %v418 = vmul.f32 %v402, 0.7978846
    %v419 = vmul.f32 %v403, 0.7978846
    %v420 = vmul.f32 %v404, 0.7978846
    %v421 = vmul.f32 %v405, 0.7978846
    %v422 = vmul.f32 %v406, 0.7978846
    %v423 = vmul.f32 %v407, 0.7978846
    %v424 = vmul.f32 %v408, 0.7978846
    %v425 = vmul.f32 %v409, 0.7978846
    %v426 = vmul.f32 %v410, 0.7978846
    %v427 = vmul.f32 %v411, 0.7978846
    %v428 = vmul.f32 %v412, 0.7978846
    %v429 = vmul.f32 %v413, 0.7978846
    %v430 = vmul.f32 %v414, 0.7978846
    %v431 = vmul.f32 %v415, 0.7978846
    %v432 = vmul.f32 %v416, 0.7978846
    %v433 = vtanh.pop %v417
    %v434 = vtanh.pop %v418
    %v435 = vtanh.pop %v419
    %v436 = vtanh.pop %v420
    %v437 = vtanh.pop %v421
    %v438 = vtanh.pop %v422
    %v439 = vtanh.pop %v423
    %v440 = vtanh.pop %v424
    %v441 = vtanh.pop %v425
    %v442 = vtanh.pop %v426
    %v443 = vtanh.pop %v427
    %v444 = vtanh.pop %v428
    %v445 = vtanh.pop %v429
    %v446 = vtanh.pop %v430
    %v447 = vtanh.pop %v431
    %v448 = vtanh.pop %v432
    %v449 = vadd.f32 %v433, 1.0
    %v450 = vadd.f32 %v434, 1.0
    %v451 = vadd.f32 %v435, 1.0
    %v452 = vadd.f32 %v436, 1.0
    %v453 = vadd.f32 %v437, 1.0
    %v454 = vadd.f32 %v438, 1.0
    %v455 = vadd.f32 %v439, 1.0
    %v456 = vadd.f32 %v440, 1.0
    %v457 = vadd.f32 %v441, 1.0
    %v458 = vadd.f32 %v442, 1.0
    %v459 = vadd.f32 %v443, 1.0
    %v460 = vadd.f32 %v444, 1.0
    %v461 = vadd.f32 %v445, 1.0
    %v462 = vadd.f32 %v446, 1.0
    %v463 = vadd.f32 %v447, 1.0
    %v464 = vadd.f32 %v448, 1.0
    %v465 = vmul.f32 %v449, 0.5
    %v466 = vmul.f32 %v450, 0.5
    %v467 = vmul.f32 %v451, 0.5
    %v468 = vmul.f32 %v452, 0.5
    %v469 = vmul.f32 %v453, 0.5
    %v470 = vmul.f32 %v454, 0.5
    %v471 = vmul.f32 %v455, 0.5
    %v472 = vmul.f32 %v456, 0.5
    %v473 = vmul.f32 %v457, 0.5
    %v474 = vmul.f32 %v458, 0.5
    %v475 = vmul.f32 %v459, 0.5
    %v476 = vmul.f32 %v460, 0.5
    %v477 = vmul.f32 %v461, 0.5
    %v478 = vmul.f32 %v462, 0.5
    %v479 = vmul.f32 %v463, 0.5
    %v480 = vmul.f32 %v464, 0.5
    %v481 = vmul.f32 %v305, %v465
    %v482 = vmul.f32 %v334, %v466
    %v483 = vmul.f32 %v307, %v467
    %v484 = vmul.f32 %v336, %v468
    %v485 = vmul.f32 %v310, %v469
    %v486 = vmul.f32 %v339, %v470
    %v487 = vmul.f32 %v312, %v471
    %v488 = vmul.f32 %v341, %v472
    %v489 = vmul.f32 %v315, %v473
    %v490 = vmul.f32 %v344, %v474
    %v491 = vmul.f32 %v317, %v475
    %v492 = vmul.f32 %v346, %v476
    %v493 = vmul.f32 %v320, %v477
    %v494 = vmul.f32 %v349, %v478
    %v495 = vmul.f32 %v322, %v479
    %v496 = vmul.f32 %v351, %v480
    %v497 = vld [vmem:[%s5] sm:$0xf]
    %v498 = vld [vmem:[%s5 + $0x4] sm:$0xf]
    %v499 = vld [vmem:[%s5 + $0x8] sm:$0xf]
    %v500 = vld [vmem:[%s5 + $0xc] sm:$0xf]
    %v501 = vpack.c.bf16 %v483, %v481
    %v502 = vpack.c.bf16 %v484, %v482
    %v503 = vpack.c.bf16 %v487, %v485
    %v504 = vpack.c.bf16 %v488, %v486
    %v505 = vpack.c.bf16 %v491, %v489
    %v506 = vpack.c.bf16 %v492, %v490
    %v507 = vpack.c.bf16 %v495, %v493
    %v508 = vpack.c.bf16 %v496, %v494
    %v509 = vld [vmem:[%s6] sm:$0xff]
    %v510 = vld [vmem:[%s6 + $0x8] sm:$0xff]
    %v511 = vld [vmem:[%s6 + $0x10] sm:$0xff]
    %v512 = vld [vmem:[%s6 + $0x18] sm:$0xff]
    %514 = vset.pattern.permute.xlu0 0
    %515 = vperm.xlu0 %514, %v509
    %v516 = vpop.permute.xlu0 %515
    %519 = vset.pattern.permute.xlu0 0
    %520 = vperm.xlu0 %519, %v510
    %v521 = vpop.permute.xlu0 %520
    %524 = vset.pattern.permute.xlu0 0
    %525 = vperm.xlu0 %524, %v511
    %v526 = vpop.permute.xlu0 %525
    %529 = vset.pattern.permute.xlu0 0
    %530 = vperm.xlu0 %529, %v512
    %v531 = vpop.permute.xlu0 %530
    %v537 = vunpack.c.l.b16 %v497
    %v538 = vunpack.c.l.b16 %v498
    %v539 = vunpack.c.l.b16 %v499
    %v540 = vunpack.c.l.b16 %v500
    %v541 = vpack.c.b16 %v538, %v537
    %v542 = vpack.c.b16 %v540, %v539
    %vm543 = vcmask 523264
    %v545 = vsel %vm543, %v541, 0
    %v548 = vsel %vm543, %v542, 0
    %550 = vmatpush.bf16.msra.mxu0 0
    %551 = vmatpush.bf16.msra.mxu0 0
    %552 = vmatpush.bf16.msra.mxu0 0
    %553 = vmatpush.bf16.msra.mxu0 0
    %554 = vmatpush.bf16.msra.mxu0 %v507
    %555 = vmatpush.bf16.msra.mxu0 %v505
    %556 = vmatpush.bf16.msra.mxu0 %v503
    %557 = vmatpush.bf16.msra.mxu0 %v501
    %558 = vmatmul.bf16.gmra.mxu0 %v545
    %v559 = vpop.f32.mrf.mxu0
    %v560 = vadd.f32 %v516, %v559
    %v561 = vpop.f32.mrf.mxu0
    %v562 = vadd.f32 %v521, %v561
    %563 = vmatmul.bf16.gmra.mxu0 %v548
    %v564 = vpop.f32.mrf.mxu0
    %v565 = vadd.f32 %v526, %v564
    %v566 = vpop.f32.mrf.mxu0
    %v567 = vadd.f32 %v531, %v566
    %568 = vdwg.mxu0
    %569 = vmatpush.bf16.msra.mxu0 0
    %570 = vmatpush.bf16.msra.mxu0 0
    %571 = vmatpush.bf16.msra.mxu0 0
    %572 = vmatpush.bf16.msra.mxu0 0
    %573 = vmatpush.bf16.msra.mxu0 %v508
    %574 = vmatpush.bf16.msra.mxu0 %v506
    %575 = vmatpush.bf16.msra.mxu0 %v504
    %576 = vmatpush.bf16.msra.mxu0 %v502
    %577 = vmatmul.bf16.gmra.mxu0 %v545
    %v578 = vpop.f32.mrf.mxu0
    %v579 = vadd.f32 %v516, %v578
    %v580 = vpop.f32.mrf.mxu0
    %v581 = vadd.f32 %v521, %v580
    %582 = vmatmul.bf16.gmra.mxu0 %v548
    %v583 = vpop.f32.mrf.mxu0
    %v584 = vadd.f32 %v526, %v583
    %v585 = vpop.f32.mrf.mxu0
    %v586 = vadd.f32 %v531, %v585
    %587 = vdwg.mxu0
    %588 = vst [vmem:[#allocation2] sm:$0xff] %v560
    %589 = vst.msk [vmem:[#allocation2 + $0x8] sm:$0xff] %vm45, %v579
    %590 = vst [vmem:[#allocation2 + $0x10] sm:$0xff] %v562
    %591 = vst.msk [vmem:[#allocation2 + $0x18] sm:$0xff] %vm45, %v581
    %592 = vst [vmem:[#allocation2 + $0x20] sm:$0xff] %v565
    %593 = vst.msk [vmem:[#allocation2 + $0x28] sm:$0xff] %vm45, %v584
    %594 = vst [vmem:[#allocation2 + $0x30] sm:$0xff] %v567
    %595 = vst.msk [vmem:[#allocation2 + $0x38] sm:$0xff] %vm45, %v586
    // Predicated region
    $region30: #{tpu_custom_call.1} parent=1 // pred_check
      _
    $region31: #{tpu_custom_call.1} parent=1 // pred_check_branch
      %597 = sbr.rel (0) target = $region33
    $region32: #{tpu_custom_call.1} parent=1 // pred_region
      %599 = vsyncadd [#allocation3], 0
      %s600 = sshll.u32 [#allocation2], 4
      %s601 = int_to_ptr.vmem [resolvable:$true] %s600
      %s602 = sshll.u32 %s7, 4
      %s603 = int_to_ptr.hbm [resolvable:$true] %s602
      %608 = dma.vmem_to_hbm [thread:$0]  %s601, 1024, %s603, [#allocation3], 256, 256, 16
    $region33: #{tpu_custom_call.1} parent=1 // pred_fallthru
      _
    // Predicated region
    $region34: #{tpu_custom_call.1} parent=1 // pred_check
      _
    $region35: #{tpu_custom_call.1} parent=1 // pred_check_branch
      %610 = sbr.rel (0) target = $region37
    $region36: #{tpu_custom_call.1} parent=1 // pred_region
      %612 = dma.done [#allocation3], 1024
    $region37: #{tpu_custom_call.1} parent=1 // pred_fallthru
      _
    %613 = vsyncpa [#allocation3], 1

</llo_original>
